<compile_context>
chip_gen: v7x
topology: tpu7x:2x2x1
jax: 0.10.0
libtpu: 0.0.40
codegen_flags: <defaults>
</compile_context>

<pallas_src>
import functools

import jax
import jax.numpy as jnp
from jax.experimental import pallas as pl
from jax.experimental.pallas import tpu as pltpu


def _leaky_relu(h):
    # For slope 0.2 < 1, maximum(h, 0.2*h) == LeakyReLU(0.2); one fewer VALU
    # pass than where(h >= 0, h, 0.2*h).
    return jnp.maximum(h, 0.2 * h)


def _stats_kernel(x_ref, w1t_ref, b1_ref, w2t_ref, psum_ref, pssq_ref, *,
                  hw, t_hw, need_mask):
    """conv1 + LeakyReLU + conv2 (no bias); per-tile channel sum / sum-of-squares."""
    x = x_ref[0]                                                       # (c_in, t_hw)
    h1 = jnp.dot(w1t_ref[...], x, preferred_element_type=jnp.float32) + b1_ref[...]
    h1 = _leaky_relu(h1).astype(w2t_ref.dtype)
    h2 = jnp.dot(w2t_ref[...], h1, preferred_element_type=jnp.float32)  # (c2, t_hw) f32
    c2 = h2.shape[0]

    def _write(h):
        psum_ref[...] = jnp.sum(h, axis=1).reshape(1, 1, 1, c2)
        pssq_ref[...] = jnp.sum(h * h, axis=1).reshape(1, 1, 1, c2)

    if need_mask:
        # Trace-time switch; only the tail tile pays the iota/cmp/select cost.
        j = pl.program_id(1)
        last = pl.num_programs(1) - 1

        @pl.when(j < last)
        def _():
            _write(h2)

        @pl.when(j == last)
        def _():
            col = jax.lax.broadcasted_iota(jnp.int32, h2.shape, 1)
            # Select-mask (not multiply) so garbage/NaN lanes cannot propagate.
            _write(jnp.where(col < hw - j * t_hw, h2, 0.0))
    else:
        _write(h2)


def _fwd_kernel(x_ref, w1t_ref, b1_ref, w2s_ref, shift_ref, w3_ref, o_ref):
    """Recompute h1, conv2 with BN scale folded into w2, + shift, LeakyReLU, conv3."""
    x = x_ref[0]                                                       # (c_in, t_hw)
    h1 = jnp.dot(w1t_ref[...], x, preferred_element_type=jnp.float32) + b1_ref[...]
    h1 = _leaky_relu(h1).astype(w2s_ref.dtype)
    hn = jnp.dot(w2s_ref[...], h1, preferred_element_type=jnp.float32) + shift_ref[...]
    hn = _leaky_relu(hn).astype(w3_ref.dtype)
    o = jnp.dot(w3_ref[...], hn, preferred_element_type=jnp.float32)   # (1, t_hw)
    o_ref[...] = o[None].astype(o_ref.dtype)                           # lane-dense


def pixel_discriminator_forward(x_nchw, params, *, t_hw=8192,
                                matmul_dtype=jnp.bfloat16):
    w1, b1, w2, gamma, beta, w3 = params
    n, c_in, hh, ww = x_nchw.shape
    hw = hh * ww
    m = n * hw
    ndf = w1.shape[1]
    c2 = w2.shape[1]

    # Lane tile: multiple of 128, no larger than needed (default 8192 amortizes
    # the per-grid-step overhead; per-step VMEM footprint stays ~10 MiB f32).
    t_hw = max(128, (min(t_hw, pl.cdiv(hw, 128) * 128) // 128) * 128)
    n_j = pl.cdiv(hw, t_hw)
    need_mask = (n_j * t_hw) != hw  # tail-tile lanes are garbage (no jnp.pad of x)

    # NCHW -> (N, C, HW): channels-on-sublanes / pixels-on-lanes.  No padded
    # copy of x through HBM; Pallas edge-block semantics cover the tail tile.
    x3 = x_nchw.reshape(n, c_in, hw).astype(matmul_dtype)

    # Weights in channels-on-sublanes orientation (tiny one-time XLA reshapes).
    w1t = jnp.asarray(w1, jnp.float32).T.astype(matmul_dtype)      # (ndf, c_in)
    b1c = jnp.asarray(b1, jnp.float32).reshape(ndf, 1)             # (ndf, 1) f32
    w2t = jnp.asarray(w2, jnp.float32).T.astype(matmul_dtype)      # (c2, ndf)
    w3r = jnp.asarray(w3, jnp.float32).reshape(1, c2).astype(matmul_dtype)

    cparams = pltpu.CompilerParams(
        dimension_semantics=("parallel", "parallel"),
        vmem_limit_bytes=48 * 1024 * 1024)

    # ---- Pass 1: BatchNorm batch statistics, per-(batch, tile) partials ----
    psum, pssq = pl.pallas_call(
        functools.partial(_stats_kernel, hw=hw, t_hw=t_hw, need_mask=need_mask),
        out_shape=(
            jax.ShapeDtypeStruct((n, n_j, 1, c2), jnp.float32),
            jax.ShapeDtypeStruct((n, n_j, 1, c2), jnp.float32),
        ),
        grid_spec=pltpu.PrefetchScalarGridSpec(
            num_scalar_prefetch=0,
            grid=(n, n_j),
            in_specs=[
                pl.BlockSpec((1, c_in, t_hw), lambda b, j: (b, 0, j)),
                pl.BlockSpec((ndf, c_in), lambda b, j: (0, 0)),
                pl.BlockSpec((ndf, 1), lambda b, j: (0, 0)),
                pl.BlockSpec((c2, ndf), lambda b, j: (0, 0)),
            ],
            out_specs=(
                pl.BlockSpec((1, 1, 1, c2), lambda b, j: (b, j, 0, 0)),
                pl.BlockSpec((1, 1, 1, c2), lambda b, j: (b, j, 0, 0)),
            ),
        ),
        compiler_params=cparams,
    )(x3, w1t, b1c, w2t)

    # Tiny cross-tile combine -> training-mode BatchNorm (biased var, eps=1e-5).
    # TODO(synk): E[x^2]-E[x]^2 in f32 can lose precision for very large M with
    # strongly non-centered activations; a centered two-pass variant would be safer.
    sum_c = jnp.sum(psum[:, :, 0, :], axis=(0, 1))
    ssq_c = jnp.sum(pssq[:, :, 0, :], axis=(0, 1))
    mean = sum_c / m
    var = jnp.maximum(ssq_c / m - mean * mean, 0.0)
    eps = 1e-5
    scale = jnp.asarray(gamma, jnp.float32) / jnp.sqrt(var + eps)
    shift = jnp.asarray(beta, jnp.float32) - mean * scale

    # Fold BN scale into conv2 weights (exact: conv2 has no bias, BN is linear).
    w2s = (w2t.astype(jnp.float32) * scale[:, None]).astype(matmul_dtype)

    # ---- Pass 2: recompute h1, folded conv2+BN, + shift, LeakyReLU, conv3 ----
    out = pl.pallas_call(
        _fwd_kernel,
        out_shape=jax.ShapeDtypeStruct((n, 1, hw), jnp.float32),
        grid_spec=pltpu.PrefetchScalarGridSpec(
            num_scalar_prefetch=0,
            grid=(n, n_j),
            in_specs=[
                pl.BlockSpec((1, c_in, t_hw), lambda b, j: (b, 0, j)),
                pl.BlockSpec((ndf, c_in), lambda b, j: (0, 0)),
                pl.BlockSpec((ndf, 1), lambda b, j: (0, 0)),
                pl.BlockSpec((c2, ndf), lambda b, j: (0, 0)),
                pl.BlockSpec((c2, 1), lambda b, j: (0, 0)),
                pl.BlockSpec((1, c2), lambda b, j: (0, 0)),
            ],
            out_specs=pl.BlockSpec((1, 1, t_hw), lambda b, j: (b, 0, j)),
        ),
        compiler_params=cparams,
    )(x3, w1t, b1c, w2s, shift.reshape(c2, 1), w3r)

    # (N, 1, HW) is already NCHW pixel order; tail-tile overflow writes were
    # discarded by Pallas, so just restore H/W.
    return out.reshape(n, 1, hh, ww)


def init_params(key, input_nc, ndf):
    """Deterministic synthetic init (PyTorch-style N(0, 0.02) conv weights)."""
    k1, k2, k3, k4, k5, k6 = jax.random.split(key, 6)
    w1 = jax.random.normal(k1, (input_nc, ndf), jnp.float32) * 0.02      # Conv1 (bias)
    b1 = jax.random.normal(k2, (ndf,), jnp.float32) * 0.02
    w2 = jax.random.normal(k3, (ndf, 2 * ndf), jnp.float32) * 0.02       # Conv2, no bias
    gamma = 1.0 + 0.1 * jax.random.normal(k4, (2 * ndf,), jnp.float32)   # BN affine
    beta = 0.1 * jax.random.normal(k5, (2 * ndf,), jnp.float32)
    w3 = jax.random.normal(k6, (2 * ndf, 1), jnp.float32) * 0.02         # Conv3, no bias
    return (w1, b1, w2, gamma, beta, w3)


def reference_forward(x_nchw, params):
    """Pure-JAX f32 reference of the PyTorch forward (training-mode BatchNorm)."""
    w1, b1, w2, gamma, beta, w3 = params
    n, c, hh, ww = x_nchw.shape
    xm = jnp.transpose(x_nchw, (0, 2, 3, 1)).reshape(-1, c).astype(jnp.float32)
    h1 = xm @ w1 + b1
    h1 = jnp.where(h1 >= 0, h1, 0.2 * h1)
    h2 = h1 @ w2
    mean = h2.mean(axis=0)
    var = h2.var(axis=0)
    hn = (h2 - mean) / jnp.sqrt(var + 1e-5) * gamma + beta
    hn = jnp.where(hn >= 0, hn, 0.2 * hn)
    o = hn @ w3
    return jnp.transpose(o.reshape(n, hh, ww, 1), (0, 3, 1, 2))


if __name__ == "__main__":
    key = jax.random.PRNGKey(0)

    # Case 1: canonical shapes (input_nc=4, ndf=64), default bf16 MXU path.
    kx, kp, key = jax.random.split(key, 3)
    x = jax.random.normal(kx, (2, 4, 16, 16), jnp.float32)
    params = init_params(kp, 4, 64)
    out = jax.block_until_ready(pixel_discriminator_forward(x, params))
    assert out.shape == (2, 1, 16, 16), out.shape
    ref = reference_forward(x, params)
    assert jnp.allclose(out, ref, rtol=5e-2, atol=5e-2), \
        "mismatch vs reference (case 1, bf16)"

    # Case 1b: f32 MXU path — exact-semantics check at tight tolerance.
    out_f32 = jax.block_until_ready(
        pixel_discriminator_forward(x, params, matmul_dtype=jnp.float32))
    assert jnp.allclose(out_f32, ref, rtol=1e-4, atol=1e-4), \
        "mismatch vs reference (case 1, f32)"

    # Case 2: odd spatial size -> exercises the unpadded tail-tile mask path.
    kx2, kp2 = jax.random.split(key)
    x2 = jax.random.normal(kx2, (1, 3, 9, 11), jnp.float32)
    params2 = init_params(kp2, 3, 8)
    out2 = jax.block_until_ready(
        pixel_discriminator_forward(x2, params2, matmul_dtype=jnp.float32))
    assert out2.shape == (1, 1, 9, 11), out2.shape
    ref2 = reference_forward(x2, params2)
    assert jnp.allclose(out2, ref2, rtol=1e-4, atol=1e-4), \
        "mismatch vs reference (case 2, f32, masked tail tile)"

    print("KERNEL_OK")
</pallas_src>

<mosaic_0001>
module attributes {stable_mosaic.version = 11 : i64} {
  func.func @_stats_kernel(%arg0: i32, %arg1: i32, %arg2: memref<1x4x256xbf16, #tpu.memory_space<vmem>>, %arg3: memref<64x4xbf16, #tpu.memory_space<vmem>>, %arg4: memref<64x1xf32, #tpu.memory_space<vmem>>, %arg5: memref<128x64xbf16, #tpu.memory_space<vmem>>, %arg6: memref<1x1x1x128xf32, #tpu.memory_space<vmem>>, %arg7: memref<1x1x1x128xf32, #tpu.memory_space<vmem>>) attributes {dimension_semantics = [#tpu.dimension_semantics<parallel>, #tpu.dimension_semantics<parallel>], iteration_bounds = array<i64: 2, 1>, scalar_prefetch = 0 : i64, scratch_operands = 0 : i64, tpu.core_type = #tpu.core_type<tc>, window_params = [{transform_indices = @transform_0, window_bounds = array<i64: 1, 4, 256>}, {pipeline_mode = #tpu.pipeline_mode<synchronous>, transform_indices = @transform_1, window_bounds = array<i64: 64, 4>}, {pipeline_mode = #tpu.pipeline_mode<synchronous>, transform_indices = @transform_2, window_bounds = array<i64: 64, 1>}, {pipeline_mode = #tpu.pipeline_mode<synchronous>, transform_indices = @transform_3, window_bounds = array<i64: 128, 64>}, {transform_indices = @transform_4, window_bounds = array<i64: 1, 1, 1, 128>}, {transform_indices = @transform_5, window_bounds = array<i64: 1, 1, 1, 128>}]} {
    %c0 = arith.constant 0 : index
    %c0_0 = arith.constant 0 : index
    %c0_1 = arith.constant 0 : index
    %0 = vector.load %arg2[%c0, %c0_0, %c0_1] : memref<1x4x256xbf16, #tpu.memory_space<vmem>>, vector<1x4x256xbf16>
    %1 = vector.shape_cast %0 : vector<1x4x256xbf16> to vector<4x256xbf16>
    %c0_2 = arith.constant 0 : index
    %c0_3 = arith.constant 0 : index
    %2 = vector.load %arg3[%c0_2, %c0_3] : memref<64x4xbf16, #tpu.memory_space<vmem>>, vector<64x4xbf16>
    %cst = arith.constant dense<0.000000e+00> : vector<64x256xf32>
    %3 = tpu.matmul %2, %1, %cst {dimension_numbers = #tpu.dot_dimension_numbers<[1], [0], [0], [1], [0, 0, 1, 1], [], []>} : vector<64x4xbf16>, vector<4x256xbf16>, vector<64x256xf32> -> vector<64x256xf32>
    %c0_4 = arith.constant 0 : index
    %c0_5 = arith.constant 0 : index
    %4 = vector.load %arg4[%c0_4, %c0_5] : memref<64x1xf32, #tpu.memory_space<vmem>>, vector<64x1xf32>
    %5 = vector.broadcast %4 : vector<64x1xf32> to vector<64x256xf32>
    %6 = arith.addf %3, %5 : vector<64x256xf32>
    %cst_6 = arith.constant 2.000000e-01 : f32
    %7 = vector.broadcast %cst_6 : f32 to vector<64x256xf32>
    %8 = arith.mulf %7, %6 : vector<64x256xf32>
    %9 = arith.maximumf %6, %8 : vector<64x256xf32>
    %10 = arith.truncf %9 : vector<64x256xf32> to vector<64x256xbf16>
    %c0_7 = arith.constant 0 : index
    %c0_8 = arith.constant 0 : index
    %11 = vector.load %arg5[%c0_7, %c0_8] : memref<128x64xbf16, #tpu.memory_space<vmem>>, vector<128x64xbf16>
    %cst_9 = arith.constant dense<0.000000e+00> : vector<128x256xf32>
    %12 = tpu.matmul %11, %10, %cst_9 {dimension_numbers = #tpu.dot_dimension_numbers<[1], [0], [0], [1], [0, 0, 1, 1], [], []>} : vector<128x64xbf16>, vector<64x256xbf16>, vector<128x256xf32> -> vector<128x256xf32>
    %cst_10 = arith.constant dense<0.000000e+00> : vector<128xf32>
    %13 = vector.multi_reduction <add>, %12, %cst_10 [1] : vector<128x256xf32> to vector<128xf32>
    %14 = vector.shape_cast %13 : vector<128xf32> to vector<1x1x1x128xf32>
    %c0_11 = arith.constant 0 : index
    %c0_12 = arith.constant 0 : index
    %c0_13 = arith.constant 0 : index
    %c0_14 = arith.constant 0 : index
    %15 = vector.load %arg6[%c0_11, %c0_12, %c0_13, %c0_14] : memref<1x1x1x128xf32, #tpu.memory_space<vmem>>, vector<1x1x1x128xf32>
    tpu.vector_store %arg6[%c0_11, %c0_12, %c0_13, %c0_14], %14 {strides = array<i32>} : memref<1x1x1x128xf32, #tpu.memory_space<vmem>>, vector<1x1x1x128xf32>,
    %16 = arith.mulf %12, %12 : vector<128x256xf32>
    %cst_15 = arith.constant dense<0.000000e+00> : vector<128xf32>
    %17 = vector.multi_reduction <add>, %16, %cst_15 [1] : vector<128x256xf32> to vector<128xf32>
    %18 = vector.shape_cast %17 : vector<128xf32> to vector<1x1x1x128xf32>
    %c0_16 = arith.constant 0 : index
    %c0_17 = arith.constant 0 : index
    %c0_18 = arith.constant 0 : index
    %c0_19 = arith.constant 0 : index
    %19 = vector.load %arg7[%c0_16, %c0_17, %c0_18, %c0_19] : memref<1x1x1x128xf32, #tpu.memory_space<vmem>>, vector<1x1x1x128xf32>
    tpu.vector_store %arg7[%c0_16, %c0_17, %c0_18, %c0_19], %18 {strides = array<i32>} : memref<1x1x1x128xf32, #tpu.memory_space<vmem>>, vector<1x1x1x128xf32>,
    return
  }
  func.func @transform_0(%arg0: i32, %arg1: i32) -> (i32, i32, i32) {
    %c0_i32 = arith.constant 0 : i32
    %c0_i32_0 = arith.constant 0 : i32
    return %arg0, %c0_i32, %arg1 : i32, i32, i32
  }
  func.func @transform_1(%arg0: i32, %arg1: i32) -> (i32, i32) {
    %c0_i32 = arith.constant 0 : i32
    %c0_i32_0 = arith.constant 0 : i32
    %c0_i32_1 = arith.constant 0 : i32
    return %c0_i32, %c0_i32_0 : i32, i32
  }
  func.func @transform_2(%arg0: i32, %arg1: i32) -> (i32, i32) {
    %c0_i32 = arith.constant 0 : i32
    %c0_i32_0 = arith.constant 0 : i32
    %c0_i32_1 = arith.constant 0 : i32
    return %c0_i32, %c0_i32_0 : i32, i32
  }
  func.func @transform_3(%arg0: i32, %arg1: i32) -> (i32, i32) {
    %c0_i32 = arith.constant 0 : i32
    %c0_i32_0 = arith.constant 0 : i32
    %c0_i32_1 = arith.constant 0 : i32
    return %c0_i32, %c0_i32_0 : i32, i32
  }
  func.func @transform_4(%arg0: i32, %arg1: i32) -> (i32, i32, i32, i32) {
    %c0_i32 = arith.constant 0 : i32
    %c0_i32_0 = arith.constant 0 : i32
    %c0_i32_1 = arith.constant 0 : i32
    return %arg0, %arg1, %c0_i32, %c0_i32_0 : i32, i32, i32, i32
  }
  func.func @transform_5(%arg0: i32, %arg1: i32) -> (i32, i32, i32, i32) {
    %c0_i32 = arith.constant 0 : i32
    %c0_i32_0 = arith.constant 0 : i32
    %c0_i32_1 = arith.constant 0 : i32
    return %arg0, %arg1, %c0_i32, %c0_i32_0 : i32, i32, i32, i32
  }
}

</mosaic_0001>

<llo_original>
// kernel: tpu_custom_call.1
$region0: #{tpu_custom_call.1}
  #allocation0 [shape = 'u32[]', space=smem, size = 0x4, offset = 0x4, fixed_abs, tag = 'smem constant byte address 0x4 - core index']
  #allocation1 [shape = 'u32[144,128]{1,0:T(1,128)}', space=vmem, size = 0x12000, scoped, tag = 'internal scratch']
  %s0 = inlined_call_operand.vmem [shape: bf16[2,4,256], index: 0, kind: input, shape index: {}]
  %s1 = inlined_call_operand.vmem [shape: bf16[64,4], index: 1, kind: input, shape index: {}]
  %s2 = inlined_call_operand.vmem [shape: f32[64,1], index: 2, kind: input, shape index: {}]
  %s3 = inlined_call_operand.vmem [shape: bf16[128,64], index: 3, kind: input, shape index: {}]
  %s4 = inlined_call_operand.hbm [shape: f32[2,1,1,128], index: 4, kind: output, shape index: {0}]
  %s5 = inlined_call_operand.hbm [shape: f32[2,1,1,128], index: 5, kind: output, shape index: {1}]
  %6 = xla_tuple %s4, %s5
  %s7 = sld [smem:[#allocation0]]
  $region57: #{tpu_custom_call.1} parent=0
    _
  %s9 = ssub.s32 1, %s7
  %s10 = scalar_select 0, %s9, %s7
  $region1: #{tpu_custom_call.1} parent=0
    #allocation2 [shape = 'u8[1024]{0}', space=vmem, size = 0x400, scoped, tag = 'output window, operand 0']
    #allocation3 [shape = 's32[2]{0}', space=sflag, size = 0x8, scoped, tag = 'scoped memory for tpu_custom_call.1']
    #allocation4 [shape = 'u8[1024]{0}', space=vmem, size = 0x400, scoped, tag = 'output window, operand 1']
    #allocation5 [shape = 's32[2]{0}', space=sflag, size = 0x8, scoped, tag = 'scoped memory for tpu_custom_call.1']
    %11 = vsyncpa [#allocation3], 0
    %s12 = scalar_lea.sflag [#allocation3], 1
    %13 = vsyncpa %s12, 0
    %14 = vsyncpa [#allocation5], 0
    %s15 = scalar_lea.sflag [#allocation5], 1
    %16 = vsyncpa %s15, 0
    loop: start=0, step=1, limit=4
    $region2: #{tpu_custom_call.1} parent=1 // loop_pre_header
      _
    $region3: #{tpu_custom_call.1} parent=1 // loop_header
      %s18 = sphi 0, %s22
      %p19 = scmp.ge.s32.totalorder %s18, 4
      %s25 = sphi 0, %s37
      %s26 = sphi 0, %s33
      %s27 = sphi 0, %s25
      %s28 = sphi 0, %s26
      %s29 = sphi 0, %s27
      %s30 = sphi 0, %s28
      %s42 = sphi 0, %s44
      %s45 = sphi 0, %s42
      %s46 = sphi 0, %s45
      %s62 = sphi 0, %s46
      %s66 = sphi 0, %s66
      %s68 = sphi 0, %s66
      %s69 = sphi 0, %s68
      %s83 = sphi 0, %s69
      %s87 = sphi 0, %s87
      %s89 = sphi 0, %s87
      %s90 = sphi 0, %s89
      %s104 = sphi 0, %s90
      %s108 = sphi 0, %s108
      %s110 = sphi 0, %s108
      %s111 = sphi 0, %s110
      %s125 = sphi 0, %s111
      %s133 = sphi 0, %s135
      %s136 = sphi 0, %s133
      %s137 = sphi 0, %s136
      %s153 = sphi 0, %s137
      %s161 = sphi 0, %s163
      %s164 = sphi 0, %s161
      %s165 = sphi 0, %s164
      %s181 = sphi 0, %s165
    $region4: #{tpu_custom_call.1} parent=1 // loop_header_branch
      %21 = sbr.rel (%p19) target = $region8
    $region5: #{tpu_custom_call.1} parent=1 // loop_body
      %s23 = ssub.s32 %s18, 1
      %s24 = ssub.s32 %s18, 2
      %s31 = sadd.s32 1, %s26
      %p32 = scmp.ge.s32.totalorder %s31, 1
      %s33 = scalar_select %p32, 0, %s31
      %s34 = sadd.s32 1, %s25
      %s35 = scalar_select %p32, %s34, %s25
      %p36 = scmp.ge.s32.totalorder %s35, 2
      %s37 = scalar_select %p36, 0, %s35
      %s38 = ssub.s32 %s25, %s37
      %s39 = ssub.s32 %s26, %s33
      %s40 = sor.u32 %s38, %s39
      %p41 = scmp.eq.s32.totalorder %s40, 0
      %s43 = sadd.s32 %s42, 1
      %s44 = scalar_select %p41, %s42, %s43
      %p47 = pneg %p41
      %p48 = scmp.eq.s32.totalorder %s18, 1
      %p49 = por %p47, %p48
      %p50 = scmp.ne.s32.totalorder %s42, %s45
      %p51 = scmp.eq.s32.totalorder %s18, 0
      %p52 = por %p50, %p51
      %p53 = scmp.ne.s32.totalorder %s42, %s45
      %p54 = scmp.eq.s32.totalorder %s23, 1
      %p55 = por %p53, %p54
      %p56 = scmp.ne.s32.totalorder %s45, %s46
      %p57 = scmp.eq.s32.totalorder %s23, 0
      %p58 = por %p56, %p57
      %p59 = scmp.ne.s32.totalorder %s45, %s46
      %p60 = scmp.eq.s32.totalorder %s24, 1
      %p61 = por %p59, %p60
      %p63 = scmp.ne.s32.totalorder %s46, %s62
      %p64 = scmp.eq.s32.totalorder %s24, 0
      %p65 = por %p63, %p64
      %s67 = sadd.s32 %s66, 1
      %p70 = scmp.eq.s32.totalorder %s18, 1
      %p71 = scmp.ne.s32.totalorder %s66, %s68
      %p72 = scmp.eq.s32.totalorder %s18, 0
      %p73 = por %p71, %p72
      %p74 = scmp.ne.s32.totalorder %s66, %s68
      %p75 = scmp.eq.s32.totalorder %s23, 1
      %p76 = por %p74, %p75
      %p77 = scmp.ne.s32.totalorder %s68, %s69
      %p78 = scmp.eq.s32.totalorder %s23, 0
      %p79 = por %p77, %p78
      %p80 = scmp.ne.s32.totalorder %s68, %s69
      %p81 = scmp.eq.s32.totalorder %s24, 1
      %p82 = por %p80, %p81
      %p84 = scmp.ne.s32.totalorder %s69, %s83
      %p85 = scmp.eq.s32.totalorder %s24, 0
      %p86 = por %p84, %p85
      %s88 = sadd.s32 %s87, 1
      %p91 = scmp.eq.s32.totalorder %s18, 1
      %p92 = scmp.ne.s32.totalorder %s87, %s89
      %p93 = scmp.eq.s32.totalorder %s18, 0
      %p94 = por %p92, %p93
      %p95 = scmp.ne.s32.totalorder %s87, %s89
      %p96 = scmp.eq.s32.totalorder %s23, 1
      %p97 = por %p95, %p96
      %p98 = scmp.ne.s32.totalorder %s89, %s90
      %p99 = scmp.eq.s32.totalorder %s23, 0
      %p100 = por %p98, %p99
      %p101 = scmp.ne.s32.totalorder %s89, %s90
      %p102 = scmp.eq.s32.totalorder %s24, 1
      %p103 = por %p101, %p102
      %p105 = scmp.ne.s32.totalorder %s90, %s104
      %p106 = scmp.eq.s32.totalorder %s24, 0
      %p107 = por %p105, %p106
      %s109 = sadd.s32 %s108, 1
      %p112 = scmp.eq.s32.totalorder %s18, 1
      %p113 = scmp.ne.s32.totalorder %s108, %s110
      %p114 = scmp.eq.s32.totalorder %s18, 0
      %p115 = por %p113, %p114
      %p116 = scmp.ne.s32.totalorder %s108, %s110
      %p117 = scmp.eq.s32.totalorder %s23, 1
      %p118 = por %p116, %p117
      %p119 = scmp.ne.s32.totalorder %s110, %s111
      %p120 = scmp.eq.s32.totalorder %s23, 0
      %p121 = por %p119, %p120
      %p122 = scmp.ne.s32.totalorder %s110, %s111
      %p123 = scmp.eq.s32.totalorder %s24, 1
      %p124 = por %p122, %p123
      %p126 = scmp.ne.s32.totalorder %s111, %s125
      %p127 = scmp.eq.s32.totalorder %s24, 0
      %p128 = por %p126, %p127
      %s129 = ssub.s32 %s25, %s37
      %s130 = ssub.s32 %s26, %s33
      %s131 = sor.u32 %s129, %s130
      %p132 = scmp.eq.s32.totalorder %s131, 0
      %s134 = sadd.s32 %s133, 1
      %s135 = scalar_select %p132, %s133, %s134
      %p138 = pneg %p132
      %p139 = scmp.eq.s32.totalorder %s18, 1
      %p140 = por %p138, %p139
      %p141 = scmp.ne.s32.totalorder %s133, %s136
      %p142 = scmp.eq.s32.totalorder %s18, 0
      %p143 = por %p141, %p142
      %p144 = scmp.ne.s32.totalorder %s133, %s136
      %p145 = scmp.eq.s32.totalorder %s23, 1
      %p146 = por %p144, %p145
      %p147 = scmp.ne.s32.totalorder %s136, %s137
      %p148 = scmp.eq.s32.totalorder %s23, 0
      %p149 = por %p147, %p148
      %p150 = scmp.ne.s32.totalorder %s136, %s137
      %p151 = scmp.eq.s32.totalorder %s24, 1
      %p152 = por %p150, %p151
      %p154 = scmp.ne.s32.totalorder %s137, %s153
      %p155 = scmp.eq.s32.totalorder %s24, 0
      %p156 = por %p154, %p155
      %s157 = ssub.s32 %s25, %s37
      %s158 = ssub.s32 %s26, %s33
      %s159 = sor.u32 %s157, %s158
      %p160 = scmp.eq.s32.totalorder %s159, 0
      %s162 = sadd.s32 %s161, 1
      %s163 = scalar_select %p160, %s161, %s162
      %p166 = pneg %p160
      %p167 = scmp.eq.s32.totalorder %s18, 1
      %p168 = por %p166, %p167
      %p169 = scmp.ne.s32.totalorder %s161, %s164
      %p170 = scmp.eq.s32.totalorder %s18, 0
      %p171 = por %p169, %p170
      %p172 = scmp.ne.s32.totalorder %s161, %s164
      %p173 = scmp.eq.s32.totalorder %s23, 1
      %p174 = por %p172, %p173
      %p175 = scmp.ne.s32.totalorder %s164, %s165
      %p176 = scmp.eq.s32.totalorder %s23, 0
      %p177 = por %p175, %p176
      %p178 = scmp.ne.s32.totalorder %s164, %s165
      %p179 = scmp.eq.s32.totalorder %s24, 1
      %p180 = por %p178, %p179
      %p182 = scmp.ne.s32.totalorder %s165, %s181
      %p183 = scmp.eq.s32.totalorder %s24, 0
      %p184 = por %p182, %p183
      %p185 = scmp.le.s32.totalorder 1, %s18
      %p186 = scmp.lt.s32.totalorder %s18, 3
      %p187 = pnand %p185, %p186
      %p188 = pneg %p187
      // Predicated region
      $region9: #{tpu_custom_call.1} parent=5 // pred_check
        _
      $region10: #{tpu_custom_call.1} parent=5 // pred_check_branch
        %190 = sbr.rel (%p187) target = $region12
      $region11: #{tpu_custom_call.1} parent=5 // pred_region
        %s191 = ssub.s32 %s18, 1
        // Predicated region
        $region13: #{tpu_custom_call.1} parent=11 // pred_check
          %p192 = pneg %p79
        $region14: #{tpu_custom_call.1} parent=11 // pred_check_branch
          %194 = sbr.rel (%p192) target = $region16
        $region15: #{tpu_custom_call.1} parent=11 // pred_region
          _
        $region16: #{tpu_custom_call.1} parent=11 // pred_fallthru
          _
        // Predicated region
        $region17: #{tpu_custom_call.1} parent=11 // pred_check
          %p195 = pneg %p100
        $region18: #{tpu_custom_call.1} parent=11 // pred_check_branch
          %197 = sbr.rel (%p195) target = $region20
        $region19: #{tpu_custom_call.1} parent=11 // pred_region
          _
        $region20: #{tpu_custom_call.1} parent=11 // pred_fallthru
          _
        // Predicated region
        $region21: #{tpu_custom_call.1} parent=11 // pred_check
          %p198 = pneg %p121
        $region22: #{tpu_custom_call.1} parent=11 // pred_check_branch
          %200 = sbr.rel (%p198) target = $region24
        $region23: #{tpu_custom_call.1} parent=11 // pred_region
          _
        $region24: #{tpu_custom_call.1} parent=11 // pred_fallthru
          _
      $region12: #{tpu_custom_call.1} parent=5 // pred_fallthru
        _
      %p201 = scmp.lt.s32.totalorder %s18, 2
      // Predicated region
      $region25: #{tpu_custom_call.1} parent=5 // pred_check
        %p202 = pneg %p201
      $region26: #{tpu_custom_call.1} parent=5 // pred_check_branch
        %204 = sbr.rel (%p202) target = $region28
      $region27: #{tpu_custom_call.1} parent=5 // pred_region
        // Predicated region
        $region29: #{tpu_custom_call.1} parent=27 // pred_check
          %p205 = pneg %p52
        $region30: #{tpu_custom_call.1} parent=27 // pred_check_branch
          %207 = sbr.rel (%p205) target = $region32
        $region31: #{tpu_custom_call.1} parent=27 // pred_region
          %s208 = smul.u32 2, %s26
          %p209 = scmp.lt.s32.totalorder %s25, 1
          %s210 = scalar_select %p209, %s25, 1
          %p211 = scmp.lt.s32.totalorder %s208, 1
          %s212 = scalar_select %p211, %s208, 1
          %s213 = smul.addr %s210, 2
          %s214 = sadd.s32 %s212, %s213
          %s215 = smul.addr %s214, 2
          %s216 = scalar_lea.vmem %s0, %s215
          %s217 = smul.u32 2, %s26
        $region32: #{tpu_custom_call.1} parent=27 // pred_fallthru
          _
      $region28: #{tpu_custom_call.1} parent=5 // pred_fallthru
        _
      %p218 = scmp.le.s32.totalorder 1, %s18
      %p219 = scmp.lt.s32.totalorder %s18, 3
      %p220 = pnand %p218, %p219
      %p221 = pneg %p220
      // Predicated region
      $region33: #{tpu_custom_call.1} parent=5 // pred_check
        _
      $region34: #{tpu_custom_call.1} parent=5 // pred_check_branch
        %223 = sbr.rel (%p220) target = $region36
      $region35: #{tpu_custom_call.1} parent=5 // pred_region
        %s224 = ssub.s32 %s18, 1
        %s225 = smul.u32 2, %s28
        %p226 = scmp.lt.s32.totalorder %s27, 1
        %s227 = scalar_select %p226, %s27, 1
        %p228 = scmp.lt.s32.totalorder %s225, 1
        %s229 = scalar_select %p228, %s225, 1
        %s230 = smul.addr %s227, 2
        %s231 = sadd.s32 %s229, %s230
        %s232 = smul.addr %s231, 2
        %s233 = scalar_lea.vmem %s0, %s232
        %p234 = pneg %p58
        %p235 = pneg %p55
        %p236 = pneg %p79
        %p237 = pneg %p76
        %p238 = pneg %p100
        %p239 = pneg %p97
        %p240 = pneg %p121
        %p241 = pneg %p118
        %p242 = pneg %p149
        %p243 = pneg %p146
        %s244 = sand.u32 %s136, 1
        %s245 = scalar_lea.sflag [#allocation3], %s244
        %s246 = sand.u32 %s136, 1
        %s247 = scalar_lea.vmem [#allocation2], %s246
        %p248 = pneg %p177
        %p249 = pneg %p174
        %s250 = sand.u32 %s164, 1
        %s251 = scalar_lea.sflag [#allocation5], %s250
        %s252 = sand.u32 %s164, 1
        %s253 = scalar_lea.vmem [#allocation4], %s252
        %s254 = smul.u32 2, %s28
        %p255 = scmp.lt.s32.totalorder %s27, 1
        %s256 = scalar_select %p255, %s27, 1
        %p257 = scmp.lt.s32.totalorder %s254, 1
        %s258 = scalar_select %p257, %s254, 1
        %s259 = smul.addr %s256, 2
        %s260 = sadd.s32 %s258, %s259
        %s261 = smul.addr %s260, 2
        %s262 = scalar_lea.vmem %s0, %s261
        %s263 = smul.u32 2, %s28
        %v265 = vld [vmem:[%s262] sm:$0xf]
        %v266 = vld [vmem:[%s1] sm:$0xf]
        %v267 = vld [vmem:[%s1 + $0x4] sm:$0xf]
        %v268 = vld [vmem:[%s1 + $0x8] sm:$0xf]
        %v269 = vld [vmem:[%s1 + $0xc] sm:$0xf]
        %v270 = vld [vmem:[%s1 + $0x10] sm:$0xf]
        %v271 = vld [vmem:[%s1 + $0x14] sm:$0xf]
        %v272 = vld [vmem:[%s1 + $0x18] sm:$0xf]
        %v273 = vld [vmem:[%s1 + $0x1c] sm:$0xf]
        %v274 = vld [vmem:[%s2] sm:$0xff]
        %v275 = vld [vmem:[%s2 + $0x8] sm:$0xff]
        %v276 = vld [vmem:[%s2 + $0x10] sm:$0xff]
        %v277 = vld [vmem:[%s2 + $0x18] sm:$0xff]
        %v278 = vld [vmem:[%s2 + $0x20] sm:$0xff]
        %v279 = vld [vmem:[%s2 + $0x28] sm:$0xff]
        %v280 = vld [vmem:[%s2 + $0x30] sm:$0xff]
        %v281 = vld [vmem:[%s2 + $0x38] sm:$0xff]
        %283 = vset.pattern.permute.xlu0 0
        %284 = vperm.xlu0 %283, %v274
        %v285 = vpop.permute.xlu0 %284
        %288 = vset.pattern.permute.xlu0 0
        %289 = vperm.xlu0 %288, %v275
        %v290 = vpop.permute.xlu0 %289
        %293 = vset.pattern.permute.xlu0 0
        %294 = vperm.xlu0 %293, %v276
        %v295 = vpop.permute.xlu0 %294
        %298 = vset.pattern.permute.xlu0 0
        %299 = vperm.xlu0 %298, %v277
        %v300 = vpop.permute.xlu0 %299
        %303 = vset.pattern.permute.xlu0 0
        %304 = vperm.xlu0 %303, %v278
        %v305 = vpop.permute.xlu0 %304
        %308 = vset.pattern.permute.xlu0 0
        %309 = vperm.xlu0 %308, %v279
        %v310 = vpop.permute.xlu0 %309
        %313 = vset.pattern.permute.xlu0 0
        %314 = vperm.xlu0 %313, %v280
        %v315 = vpop.permute.xlu0 %314
        %318 = vset.pattern.permute.xlu0 0
        %319 = vperm.xlu0 %318, %v281
        %v320 = vpop.permute.xlu0 %319
        %v330 = vunpack.c.l.b16 %v266
        %v331 = vunpack.c.l.b16 %v267
        %v332 = vunpack.c.l.b16 %v268
        %v333 = vunpack.c.l.b16 %v269
        %v334 = vunpack.c.l.b16 %v270
        %v335 = vunpack.c.l.b16 %v271
        %v336 = vunpack.c.l.b16 %v272
        %v337 = vunpack.c.l.b16 %v273
        %v338 = vpack.c.b16 %v331, %v330
        %v339 = vpack.c.b16 %v333, %v332
        %v340 = vpack.c.b16 %v335, %v334
        %v341 = vpack.c.b16 %v337, %v336
        %v344 = vunpack.c.l.s4 1983009808
        %v345 = vunpack.c.0.s8 %v344
        %v346 = vlaneseq
        %v347 = vshrl.u32 %v346, 7
        %v348 = vsub.s32 %v345, %v347
        %v349 = vrot.slane %v265, %v348
        %v350 = vcombine.high %v349, %v349
        %vm351 = vcmask 31744
        %v353 = vsel %vm351, %v338, 0
        %v356 = vsel %vm351, %v339, 0
        %v359 = vsel %vm351, %v340, 0
        %v362 = vsel %vm351, %v341, 0
        %vm364 = vcmask 1041408
        %v366 = vsel %vm364, %v349, 0
        %v369 = vsel %vm364, %v350, 0
        %371 = vmatprep.subr.bf16.mxu0 %v369
        %372 = vmatpush1.bf16.msra.mxu0 %v366
        %373 = vmatprep.subr.bf16.mxu0 0
        %374 = vmatpush1.bf16.msra.mxu0 0
        %375 = vmatprep.subr.bf16.mxu0 0
        %376 = vmatpush1.bf16.msra.mxu0 0
        %377 = vmatprep.subr.bf16.mxu0 0
        %378 = vmatpush1.bf16.msra.mxu0 0
        %379 = vmatprep.subr.bf16.mxu0 0
        %380 = vmatpush1.bf16.msra.mxu0 0
        %381 = vmatprep.subr.bf16.mxu0 0
        %382 = vmatpush1.bf16.msra.mxu0 0
        %383 = vmatprep.subr.bf16.mxu0 0
        %384 = vmatpush1.bf16.msra.mxu0 0
        %385 = vmatprep.subr.bf16.mxu0 0
        %386 = vmatpush1.bf16.msra.mxu0 0
        %387 = vmatprep.subr.bf16.mxu0 0
        %388 = vmatpush1.bf16.msra.mxu0 0
        %389 = vmatprep.subr.bf16.mxu0 0
        %390 = vmatpush1.bf16.msra.mxu0 0
        %391 = vmatprep.subr.bf16.mxu0 0
        %392 = vmatpush1.bf16.msra.mxu0 0
        %393 = vmatprep.subr.bf16.mxu0 0
        %394 = vmatpush1.bf16.msra.mxu0 0
        %395 = vmatprep.subr.bf16.mxu0 0
        %396 = vmatpush1.bf16.msra.mxu0 0
        %397 = vmatprep.subr.bf16.mxu0 0
        %398 = vmatpush1.bf16.msra.mxu0 0
        %399 = vmatprep.subr.bf16.mxu0 0
        %400 = vmatpush1.bf16.msra.mxu0 0
        %401 = vmatprep.subr.bf16.mxu0 0
        %402 = vmatpush1.bf16.msra.mxu0 0
        %403 = vmatprep.mubr.bf16.mxu0 0
        %404 = vmatmul.mubr.bf16.gmra.mrb[0].mxu0 %v353
        %v405 = vpop.f32.mrb[0].mxu0
        %v406 = vadd.f32 %v285, %v405
        %v407 = vpop.f32.mrb[0].mxu0
        %v408 = vadd.f32 %v285, %v407
        %v409 = vpop.f32.mrb[0].mxu0
        %v410 = vadd.f32 %v290, %v409
        %v411 = vpop.f32.mrb[0].mxu0
        %v412 = vadd.f32 %v290, %v411
        %413 = vmatprep.mubr.bf16.mxu0 0
        %414 = vmatmul.mubr.bf16.gmra.mrb[0].mxu0 %v356
        %v415 = vpop.f32.mrb[0].mxu0
        %v416 = vadd.f32 %v295, %v415
        %v417 = vpop.f32.mrb[0].mxu0
        %v418 = vadd.f32 %v295, %v417
        %v419 = vpop.f32.mrb[0].mxu0
        %v420 = vadd.f32 %v300, %v419
        %v421 = vpop.f32.mrb[0].mxu0
        %v422 = vadd.f32 %v300, %v421
        %423 = vmatprep.mubr.bf16.mxu0 0
        %424 = vmatmul.mubr.bf16.gmra.mrb[0].mxu0 %v359
        %v425 = vpop.f32.mrb[0].mxu0
        %v426 = vadd.f32 %v305, %v425
        %v427 = vpop.f32.mrb[0].mxu0
        %v428 = vadd.f32 %v305, %v427
        %v429 = vpop.f32.mrb[0].mxu0
        %v430 = vadd.f32 %v310, %v429
        %v431 = vpop.f32.mrb[0].mxu0
        %v432 = vadd.f32 %v310, %v431
        %433 = vmatprep.mubr.bf16.mxu0 0
        %434 = vmatmul.mubr.bf16.gmra.mrb[0].mxu0 %v362
        %v435 = vpop.f32.mrb[0].mxu0
        %v436 = vadd.f32 %v315, %v435
        %v437 = vpop.f32.mrb[0].mxu0
        %v438 = vadd.f32 %v315, %v437
        %v439 = vpop.f32.mrb[0].mxu0
        %v440 = vadd.f32 %v320, %v439
        %v441 = vpop.f32.mrb[0].mxu0
        %v442 = vadd.f32 %v320, %v441
        %443 = vdwg.mxu0
        %v444 = vmul.f32 %v406, 0.2
        %v445 = vmul.f32 %v408, 0.2
        %v446 = vmul.f32 %v410, 0.2
        %v447 = vmul.f32 %v412, 0.2
        %v448 = vmul.f32 %v416, 0.2
        %v449 = vmul.f32 %v418, 0.2
        %v450 = vmul.f32 %v420, 0.2
        %v451 = vmul.f32 %v422, 0.2
        %v452 = vmul.f32 %v426, 0.2
        %v453 = vmul.f32 %v428, 0.2
        %v454 = vmul.f32 %v430, 0.2
        %v455 = vmul.f32 %v432, 0.2
        %v456 = vmul.f32 %v436, 0.2
        %v457 = vmul.f32 %v438, 0.2
        %v458 = vmul.f32 %v440, 0.2
        %v459 = vmul.f32 %v442, 0.2
        %v460 = vmax.f32 %v406, %v444
        %v461 = vmax.f32 %v408, %v445
        %v462 = vmax.f32 %v410, %v446
        %v463 = vmax.f32 %v412, %v447
        %v464 = vmax.f32 %v416, %v448
        %v465 = vmax.f32 %v418, %v449
        %v466 = vmax.f32 %v420, %v450
        %v467 = vmax.f32 %v422, %v451
        %v468 = vmax.f32 %v426, %v452
        %v469 = vmax.f32 %v428, %v453
        %v470 = vmax.f32 %v430, %v454
        %v471 = vmax.f32 %v432, %v455
        %v472 = vmax.f32 %v436, %v456
        %v473 = vmax.f32 %v438, %v457
        %v474 = vmax.f32 %v440, %v458
        %v475 = vmax.f32 %v442, %v459
        %v476 = vpack.c.bf16 %v462, %v460
        %v477 = vpack.c.bf16 %v463, %v461
        %v478 = vpack.c.bf16 %v466, %v464
        %v479 = vpack.c.bf16 %v467, %v465
        %v480 = vpack.c.bf16 %v470, %v468
        %v481 = vpack.c.bf16 %v471, %v469
        %v482 = vpack.c.bf16 %v474, %v472
        %v483 = vpack.c.bf16 %v475, %v473
        %v484 = vld [vmem:[%s3] sm:$0xf]
        %v485 = vld [vmem:[%s3 + $0x4] sm:$0xf]
        %v486 = vld [vmem:[%s3 + $0x8] sm:$0xf]
        %v487 = vld [vmem:[%s3 + $0xc] sm:$0xf]
        %v488 = vld [vmem:[%s3 + $0x10] sm:$0xf]
        %v489 = vld [vmem:[%s3 + $0x14] sm:$0xf]
        %v490 = vld [vmem:[%s3 + $0x18] sm:$0xf]
        %v491 = vld [vmem:[%s3 + $0x1c] sm:$0xf]
        %v492 = vld [vmem:[%s3 + $0x20] sm:$0xf]
        %v493 = vld [vmem:[%s3 + $0x24] sm:$0xf]
        %v494 = vld [vmem:[%s3 + $0x28] sm:$0xf]
        %v495 = vld [vmem:[%s3 + $0x2c] sm:$0xf]
        %v496 = vld [vmem:[%s3 + $0x30] sm:$0xf]
        %v497 = vld [vmem:[%s3 + $0x34] sm:$0xf]
        %v498 = vld [vmem:[%s3 + $0x38] sm:$0xf]
        %v499 = vld [vmem:[%s3 + $0x3c] sm:$0xf]
        %v516 = vunpack.c.l.b16 %v484
        %v517 = vunpack.c.l.b16 %v485
        %v518 = vunpack.c.l.b16 %v486
        %v519 = vunpack.c.l.b16 %v487
        %v520 = vunpack.c.l.b16 %v488
        %v521 = vunpack.c.l.b16 %v489
        %v522 = vunpack.c.l.b16 %v490
        %v523 = vunpack.c.l.b16 %v491
        %v524 = vunpack.c.l.b16 %v492
        %v525 = vunpack.c.l.b16 %v493
        %v526 = vunpack.c.l.b16 %v494
        %v527 = vunpack.c.l.b16 %v495
        %v528 = vunpack.c.l.b16 %v496
        %v529 = vunpack.c.l.b16 %v497
        %v530 = vunpack.c.l.b16 %v498
        %v531 = vunpack.c.l.b16 %v499
        %v532 = vpack.c.b16 %v517, %v516
        %v533 = vpack.c.b16 %v519, %v518
        %v534 = vpack.c.b16 %v521, %v520
        %v535 = vpack.c.b16 %v523, %v522
        %v536 = vpack.c.b16 %v525, %v524
        %v537 = vpack.c.b16 %v527, %v526
        %v538 = vpack.c.b16 %v529, %v528
        %v539 = vpack.c.b16 %v531, %v530
        %vm540 = vcmask 523264
        %v542 = vsel %vm540, %v532, 0
        %v545 = vsel %vm540, %v533, 0
        %v548 = vsel %vm540, %v534, 0
        %v551 = vsel %vm540, %v535, 0
        %v554 = vsel %vm540, %v536, 0
        %v557 = vsel %vm540, %v537, 0
        %v560 = vsel %vm540, %v538, 0
        %v563 = vsel %vm540, %v539, 0
        %565 = vmatprep.subr.bf16.mxu0 %v477
        %566 = vmatpush1.bf16.msra.mxu0 %v476
        %567 = vmatprep.subr.bf16.mxu0 %v479
        %568 = vmatpush1.bf16.msra.mxu0 %v478
        %569 = vmatprep.subr.bf16.mxu0 %v481
        %570 = vmatpush1.bf16.msra.mxu0 %v480
        %571 = vmatprep.subr.bf16.mxu0 %v483
        %572 = vmatpush1.bf16.msra.mxu0 %v482
        %573 = vmatprep.subr.bf16.mxu0 0
        %574 = vmatpush1.bf16.msra.mxu0 0
        %575 = vmatprep.subr.bf16.mxu0 0
        %576 = vmatpush1.bf16.msra.mxu0 0
        %577 = vmatprep.subr.bf16.mxu0 0
        %578 = vmatpush1.bf16.msra.mxu0 0
        %579 = vmatprep.subr.bf16.mxu0 0
        %580 = vmatpush1.bf16.msra.mxu0 0
        %581 = vmatprep.subr.bf16.mxu0 0
        %582 = vmatpush1.bf16.msra.mxu0 0
        %583 = vmatprep.subr.bf16.mxu0 0
        %584 = vmatpush1.bf16.msra.mxu0 0
        %585 = vmatprep.subr.bf16.mxu0 0
        %586 = vmatpush1.bf16.msra.mxu0 0
        %587 = vmatprep.subr.bf16.mxu0 0
        %588 = vmatpush1.bf16.msra.mxu0 0
        %589 = vmatprep.subr.bf16.mxu0 0
        %590 = vmatpush1.bf16.msra.mxu0 0
        %591 = vmatprep.subr.bf16.mxu0 0
        %592 = vmatpush1.bf16.msra.mxu0 0
        %593 = vmatprep.subr.bf16.mxu0 0
        %594 = vmatpush1.bf16.msra.mxu0 0
        %595 = vmatprep.subr.bf16.mxu0 0
        %596 = vmatpush1.bf16.msra.mxu0 0
        %597 = vmatprep.mubr.bf16.mxu0 0
        %598 = vmatmul.mubr.bf16.gmra.mrb[0].mxu0 %v542
        %v599 = vpop.f32.mrb[0].mxu0
        %v600 = vadd.f32 0.0, %v599
        %v601 = vpop.f32.mrb[0].mxu0
        %v602 = vadd.f32 0.0, %v601
        %v603 = vpop.f32.mrb[0].mxu0
        %v604 = vadd.f32 0.0, %v603
        %v605 = vpop.f32.mrb[0].mxu0
        %v606 = vadd.f32 0.0, %v605
        %607 = vmatprep.mubr.bf16.mxu0 0
        %608 = vmatmul.mubr.bf16.gmra.mrb[0].mxu0 %v545
        %v609 = vpop.f32.mrb[0].mxu0
        %v610 = vadd.f32 0.0, %v609
        %v611 = vpop.f32.mrb[0].mxu0
        %v612 = vadd.f32 0.0, %v611
        %v613 = vpop.f32.mrb[0].mxu0
        %v614 = vadd.f32 0.0, %v613
        %v615 = vpop.f32.mrb[0].mxu0
        %v616 = vadd.f32 0.0, %v615
        %617 = vmatprep.mubr.bf16.mxu0 0
        %618 = vmatmul.mubr.bf16.gmra.mrb[0].mxu0 %v548
        %v619 = vpop.f32.mrb[0].mxu0
        %v620 = vadd.f32 0.0, %v619
        %v621 = vpop.f32.mrb[0].mxu0
        %v622 = vadd.f32 0.0, %v621
        %v623 = vpop.f32.mrb[0].mxu0
        %v624 = vadd.f32 0.0, %v623
        %v625 = vpop.f32.mrb[0].mxu0
        %v626 = vadd.f32 0.0, %v625
        %627 = vmatprep.mubr.bf16.mxu0 0
        %628 = vmatmul.mubr.bf16.gmra.mrb[0].mxu0 %v551
        %v629 = vpop.f32.mrb[0].mxu0
        %v630 = vadd.f32 0.0, %v629
        %v631 = vpop.f32.mrb[0].mxu0
        %v632 = vadd.f32 0.0, %v631
        %v633 = vpop.f32.mrb[0].mxu0
        %v634 = vadd.f32 0.0, %v633
        %v635 = vpop.f32.mrb[0].mxu0
        %v636 = vadd.f32 0.0, %v635
        %637 = vmatprep.mubr.bf16.mxu0 0
        %638 = vmatmul.mubr.bf16.gmra.mrb[0].mxu0 %v554
        %v639 = vpop.f32.mrb[0].mxu0
        %v640 = vadd.f32 0.0, %v639
        %v641 = vpop.f32.mrb[0].mxu0
        %v642 = vadd.f32 0.0, %v641
        %v643 = vpop.f32.mrb[0].mxu0
        %v644 = vadd.f32 0.0, %v643
        %v645 = vpop.f32.mrb[0].mxu0
        %v646 = vadd.f32 0.0, %v645
        %647 = vmatprep.mubr.bf16.mxu0 0
        %648 = vmatmul.mubr.bf16.gmra.mrb[0].mxu0 %v557
        %v649 = vpop.f32.mrb[0].mxu0
        %v650 = vadd.f32 0.0, %v649
        %v651 = vpop.f32.mrb[0].mxu0
        %v652 = vadd.f32 0.0, %v651
        %v653 = vpop.f32.mrb[0].mxu0
        %v654 = vadd.f32 0.0, %v653
        %v655 = vpop.f32.mrb[0].mxu0
        %v656 = vadd.f32 0.0, %v655
        %657 = vmatprep.mubr.bf16.mxu0 0
        %658 = vmatmul.mubr.bf16.gmra.mrb[0].mxu0 %v560
        %v659 = vpop.f32.mrb[0].mxu0
        %v660 = vadd.f32 0.0, %v659
        %v661 = vpop.f32.mrb[0].mxu0
        %v662 = vadd.f32 0.0, %v661
        %v663 = vpop.f32.mrb[0].mxu0
        %v664 = vadd.f32 0.0, %v663
        %v665 = vpop.f32.mrb[0].mxu0
        %v666 = vadd.f32 0.0, %v665
        %667 = vmatprep.mubr.bf16.mxu0 0
        %668 = vmatmul.mubr.bf16.gmra.mrb[0].mxu0 %v563
        %v669 = vpop.f32.mrb[0].mxu0
        %v670 = vadd.f32 0.0, %v669
        %v671 = vpop.f32.mrb[0].mxu0
        %v672 = vadd.f32 0.0, %v671
        %v673 = vpop.f32.mrb[0].mxu0
        %v674 = vadd.f32 0.0, %v673
        %v675 = vpop.f32.mrb[0].mxu0
        %v676 = vadd.f32 0.0, %v675
        %677 = vdwg.mxu0
        %v678 = vadd.f32 %v600, %v602
        %679 = vadd.xlane.f32.xlu0 %v678
        %v680 = vpop.xlane.xlu0 %679
        %v681 = vadd.f32 %v604, %v606
        %682 = vadd.xlane.f32.xlu0 %v681
        %v683 = vpop.xlane.xlu0 %682
        %v684 = vadd.f32 %v610, %v612
        %685 = vadd.xlane.f32.xlu0 %v684
        %v686 = vpop.xlane.xlu0 %685
        %v687 = vadd.f32 %v614, %v616
        %688 = vadd.xlane.f32.xlu0 %v687
        %v689 = vpop.xlane.xlu0 %688
        %v690 = vadd.f32 %v620, %v622
        %691 = vadd.xlane.f32.xlu0 %v690
        %v692 = vpop.xlane.xlu0 %691
        %v693 = vadd.f32 %v624, %v626
        %694 = vadd.xlane.f32.xlu0 %v693
        %v695 = vpop.xlane.xlu0 %694
        %v696 = vadd.f32 %v630, %v632
        %697 = vadd.xlane.f32.xlu0 %v696
        %v698 = vpop.xlane.xlu0 %697
        %v699 = vadd.f32 %v634, %v636
        %700 = vadd.xlane.f32.xlu0 %v699
        %v701 = vpop.xlane.xlu0 %700
        %v702 = vadd.f32 %v640, %v642
        %703 = vadd.xlane.f32.xlu0 %v702
        %v704 = vpop.xlane.xlu0 %703
        %v705 = vadd.f32 %v644, %v646
        %706 = vadd.xlane.f32.xlu0 %v705
        %v707 = vpop.xlane.xlu0 %706
        %v708 = vadd.f32 %v650, %v652
        %709 = vadd.xlane.f32.xlu0 %v708
        %v710 = vpop.xlane.xlu0 %709
        %v711 = vadd.f32 %v654, %v656
        %712 = vadd.xlane.f32.xlu0 %v711
        %v713 = vpop.xlane.xlu0 %712
        %v714 = vadd.f32 %v660, %v662
        %715 = vadd.xlane.f32.xlu0 %v714
        %v716 = vpop.xlane.xlu0 %715
        %v717 = vadd.f32 %v664, %v666
        %718 = vadd.xlane.f32.xlu0 %v717
        %v719 = vpop.xlane.xlu0 %718
        %v720 = vadd.f32 %v670, %v672
        %721 = vadd.xlane.f32.xlu0 %v720
        %v722 = vpop.xlane.xlu0 %721
        %v723 = vadd.f32 %v674, %v676
        %724 = vadd.xlane.f32.xlu0 %v723
        %v725 = vpop.xlane.xlu0 %724
        %v742 = vlaneseq
        %v743 = vand.u32 %v742, 127
        %v744 = vlaneseq
        %v745 = vshrl.u32 %v744, 7
        %v746 = vsub.s32 %v743, %v745
        %v747 = vrot.slane %v680, %v746
        %v748 = vadd.s32 %v743, 4294967288
        %v749 = vlaneseq
        %v750 = vshrl.u32 %v749, 7
        %v751 = vsub.s32 %v748, %v750
        %v752 = vrot.slane %v683, %v751
        %vm753 = vcmask 130112
        %v754 = vsel %vm753, %v752, %v747
        %v755 = vadd.s32 %v743, 4294967280
        %v756 = vlaneseq
        %v757 = vshrl.u32 %v756, 7
        %v758 = vsub.s32 %v755, %v757
        %v759 = vrot.slane %v686, %v758
        %vm760 = vcmask 195712
        %v761 = vsel %vm760, %v759, %v754
        %v762 = vadd.s32 %v743, 4294967272
        %v763 = vlaneseq
        %v764 = vshrl.u32 %v763, 7
        %v765 = vsub.s32 %v762, %v764
        %v766 = vrot.slane %v689, %v765
        %vm767 = vcmask 261312
        %v768 = vsel %vm767, %v766, %v761
        %v769 = vadd.s32 %v743, 4294967264
        %v770 = vlaneseq
        %v771 = vshrl.u32 %v770, 7
        %v772 = vsub.s32 %v769, %v771
        %v773 = vrot.slane %v692, %v772
        %vm774 = vcmask 326912
        %v775 = vsel %vm774, %v773, %v768
        %v776 = vadd.s32 %v743, 4294967256
        %v777 = vlaneseq
        %v778 = vshrl.u32 %v777, 7
        %v779 = vsub.s32 %v776, %v778
        %v780 = vrot.slane %v695, %v779
        %vm781 = vcmask 392512
        %v782 = vsel %vm781, %v780, %v775
        %v783 = vadd.s32 %v743, 4294967248
        %v784 = vlaneseq
        %v785 = vshrl.u32 %v784, 7
        %v786 = vsub.s32 %v783, %v785
        %v787 = vrot.slane %v698, %v786
        %vm788 = vcmask 458112
        %v789 = vsel %vm788, %v787, %v782
        %v790 = vadd.s32 %v743, 4294967240
        %v791 = vlaneseq
        %v792 = vshrl.u32 %v791, 7
        %v793 = vsub.s32 %v790, %v792
        %v794 = vrot.slane %v701, %v793
        %vm795 = vcmask 523712
        %v796 = vsel %vm795, %v794, %v789
        %v797 = vadd.s32 %v743, 4294967232
        %v798 = vlaneseq
        %v799 = vshrl.u32 %v798, 7
        %v800 = vsub.s32 %v797, %v799
        %v801 = vrot.slane %v704, %v800
        %vm802 = vcmask 589312
        %v803 = vsel %vm802, %v801, %v796
        %v804 = vadd.s32 %v743, 4294967224
        %v805 = vlaneseq
        %v806 = vshrl.u32 %v805, 7
        %v807 = vsub.s32 %v804, %v806
        %v808 = vrot.slane %v707, %v807
        %vm809 = vcmask 654912
        %v810 = vsel %vm809, %v808, %v803
        %v811 = vadd.s32 %v743, 4294967216
        %v812 = vlaneseq
        %v813 = vshrl.u32 %v812, 7
        %v814 = vsub.s32 %v811, %v813
        %v815 = vrot.slane %v710, %v814
        %vm816 = vcmask 720512
        %v817 = vsel %vm816, %v815, %v810
        %v818 = vadd.s32 %v743, 4294967208
        %v819 = vlaneseq
        %v820 = vshrl.u32 %v819, 7
        %v821 = vsub.s32 %v818, %v820
        %v822 = vrot.slane %v713, %v821
        %vm823 = vcmask 786112
        %v824 = vsel %vm823, %v822, %v817
        %v825 = vadd.s32 %v743, 4294967200
        %v826 = vlaneseq
        %v827 = vshrl.u32 %v826, 7
        %v828 = vsub.s32 %v825, %v827
        %v829 = vrot.slane %v716, %v828
        %vm830 = vcmask 851712
        %v831 = vsel %vm830, %v829, %v824
        %v832 = vadd.s32 %v743, 4294967192
        %v833 = vlaneseq
        %v834 = vshrl.u32 %v833, 7
        %v835 = vsub.s32 %v832, %v834
        %v836 = vrot.slane %v719, %v835
        %vm837 = vcmask 917312
        %v838 = vsel %vm837, %v836, %v831
        %v839 = vadd.s32 %v743, 4294967184
        %v840 = vlaneseq
        %v841 = vshrl.u32 %v840, 7
        %v842 = vsub.s32 %v839, %v841
        %v843 = vrot.slane %v722, %v842
        %vm844 = vcmask 982912
        %v845 = vsel %vm844, %v843, %v838
        %v846 = vadd.s32 %v743, 4294967176
        %v847 = vlaneseq
        %v848 = vshrl.u32 %v847, 7
        %v849 = vsub.s32 %v846, %v848
        %v850 = vrot.slane %v725, %v849
        %vm851 = vcmask 1048512
        %v852 = vsel %vm851, %v850, %v845
        %854 = vst [vmem:[%s247] sm:$0x1] %v852
        %v855 = vmul.f32 %v600, %v600
        %v856 = vmul.f32 %v602, %v602
        %v857 = vmul.f32 %v604, %v604
        %v858 = vmul.f32 %v606, %v606
        %v859 = vmul.f32 %v610, %v610
        %v860 = vmul.f32 %v612, %v612
        %v861 = vmul.f32 %v614, %v614
        %v862 = vmul.f32 %v616, %v616
        %v863 = vmul.f32 %v620, %v620
        %v864 = vmul.f32 %v622, %v622
        %v865 = vmul.f32 %v624, %v624
        %v866 = vmul.f32 %v626, %v626
        %v867 = vmul.f32 %v630, %v630
        %v868 = vmul.f32 %v632, %v632
        %v869 = vmul.f32 %v634, %v634
        %v870 = vmul.f32 %v636, %v636
        %v871 = vmul.f32 %v640, %v640
        %v872 = vmul.f32 %v642, %v642
        %v873 = vmul.f32 %v644, %v644
        %v874 = vmul.f32 %v646, %v646
        %v875 = vmul.f32 %v650, %v650
        %v876 = vmul.f32 %v652, %v652
        %v877 = vmul.f32 %v654, %v654
        %v878 = vmul.f32 %v656, %v656
        %v879 = vmul.f32 %v660, %v660
        %v880 = vmul.f32 %v662, %v662
        %v881 = vmul.f32 %v664, %v664
        %v882 = vmul.f32 %v666, %v666
        %v883 = vmul.f32 %v670, %v670
        %v884 = vmul.f32 %v672, %v672
        %v885 = vmul.f32 %v674, %v674
        %v886 = vmul.f32 %v676, %v676
        %v887 = vadd.f32 %v855, %v856
        %888 = vadd.xlane.f32.xlu0 %v887
        %v889 = vpop.xlane.xlu0 %888
        %v890 = vadd.f32 %v857, %v858
        %891 = vadd.xlane.f32.xlu0 %v890
        %v892 = vpop.xlane.xlu0 %891
        %v893 = vadd.f32 %v859, %v860
        %894 = vadd.xlane.f32.xlu0 %v893
        %v895 = vpop.xlane.xlu0 %894
        %v896 = vadd.f32 %v861, %v862
        %897 = vadd.xlane.f32.xlu0 %v896
        %v898 = vpop.xlane.xlu0 %897
        %v899 = vadd.f32 %v863, %v864
        %900 = vadd.xlane.f32.xlu0 %v899
        %v901 = vpop.xlane.xlu0 %900
        %v902 = vadd.f32 %v865, %v866
        %903 = vadd.xlane.f32.xlu0 %v902
        %v904 = vpop.xlane.xlu0 %903
        %v905 = vadd.f32 %v867, %v868
        %906 = vadd.xlane.f32.xlu0 %v905
        %v907 = vpop.xlane.xlu0 %906
        %v908 = vadd.f32 %v869, %v870
        %909 = vadd.xlane.f32.xlu0 %v908
        %v910 = vpop.xlane.xlu0 %909
        %v911 = vadd.f32 %v871, %v872
        %912 = vadd.xlane.f32.xlu0 %v911
        %v913 = vpop.xlane.xlu0 %912
        %v914 = vadd.f32 %v873, %v874
        %915 = vadd.xlane.f32.xlu0 %v914
        %v916 = vpop.xlane.xlu0 %915
        %v917 = vadd.f32 %v875, %v876
        %918 = vadd.xlane.f32.xlu0 %v917
        %v919 = vpop.xlane.xlu0 %918
        %v920 = vadd.f32 %v877, %v878
        %921 = vadd.xlane.f32.xlu0 %v920
        %v922 = vpop.xlane.xlu0 %921
        %v923 = vadd.f32 %v879, %v880
        %924 = vadd.xlane.f32.xlu0 %v923
        %v925 = vpop.xlane.xlu0 %924
        %v926 = vadd.f32 %v881, %v882
        %927 = vadd.xlane.f32.xlu0 %v926
        %v928 = vpop.xlane.xlu0 %927
        %v929 = vadd.f32 %v883, %v884
        %930 = vadd.xlane.f32.xlu0 %v929
        %v931 = vpop.xlane.xlu0 %930
        %v932 = vadd.f32 %v885, %v886
        %933 = vadd.xlane.f32.xlu0 %v932
        %v934 = vpop.xlane.xlu0 %933
        %v951 = vlaneseq
        %v952 = vshrl.u32 %v951, 7
        %v953 = vsub.s32 %v743, %v952
        %v954 = vrot.slane %v889, %v953
        %v955 = vlaneseq
        %v956 = vshrl.u32 %v955, 7
        %v957 = vsub.s32 %v748, %v956
        %v958 = vrot.slane %v892, %v957
        %v959 = vsel %vm753, %v958, %v954
        %v960 = vlaneseq
        %v961 = vshrl.u32 %v960, 7
        %v962 = vsub.s32 %v755, %v961
        %v963 = vrot.slane %v895, %v962
        %v964 = vsel %vm760, %v963, %v959
        %v965 = vlaneseq
        %v966 = vshrl.u32 %v965, 7
        %v967 = vsub.s32 %v762, %v966
        %v968 = vrot.slane %v898, %v967
        %v969 = vsel %vm767, %v968, %v964
        %v970 = vlaneseq
        %v971 = vshrl.u32 %v970, 7
        %v972 = vsub.s32 %v769, %v971
        %v973 = vrot.slane %v901, %v972
        %v974 = vsel %vm774, %v973, %v969
        %v975 = vlaneseq
        %v976 = vshrl.u32 %v975, 7
        %v977 = vsub.s32 %v776, %v976
        %v978 = vrot.slane %v904, %v977
        %v979 = vsel %vm781, %v978, %v974
        %v980 = vlaneseq
        %v981 = vshrl.u32 %v980, 7
        %v982 = vsub.s32 %v783, %v981
        %v983 = vrot.slane %v907, %v982
        %v984 = vsel %vm788, %v983, %v979
        %v985 = vlaneseq
        %v986 = vshrl.u32 %v985, 7
        %v987 = vsub.s32 %v790, %v986
        %v988 = vrot.slane %v910, %v987
        %v989 = vsel %vm795, %v988, %v984
        %v990 = vlaneseq
        %v991 = vshrl.u32 %v990, 7
        %v992 = vsub.s32 %v797, %v991
        %v993 = vrot.slane %v913, %v992
        %v994 = vsel %vm802, %v993, %v989
        %v995 = vlaneseq
        %v996 = vshrl.u32 %v995, 7
        %v997 = vsub.s32 %v804, %v996
        %v998 = vrot.slane %v916, %v997
        %v999 = vsel %vm809, %v998, %v994
        %v1000 = vlaneseq
        %v1001 = vshrl.u32 %v1000, 7
        %v1002 = vsub.s32 %v811, %v1001
        %v1003 = vrot.slane %v919, %v1002
        %v1004 = vsel %vm816, %v1003, %v999
        %v1005 = vlaneseq
        %v1006 = vshrl.u32 %v1005, 7
        %v1007 = vsub.s32 %v818, %v1006
        %v1008 = vrot.slane %v922, %v1007
        %v1009 = vsel %vm823, %v1008, %v1004
        %v1010 = vlaneseq
        %v1011 = vshrl.u32 %v1010, 7
        %v1012 = vsub.s32 %v825, %v1011
        %v1013 = vrot.slane %v925, %v1012
        %v1014 = vsel %vm830, %v1013, %v1009
        %v1015 = vlaneseq
        %v1016 = vshrl.u32 %v1015, 7
        %v1017 = vsub.s32 %v832, %v1016
        %v1018 = vrot.slane %v928, %v1017
        %v1019 = vsel %vm837, %v1018, %v1014
        %v1020 = vlaneseq
        %v1021 = vshrl.u32 %v1020, 7
        %v1022 = vsub.s32 %v839, %v1021
        %v1023 = vrot.slane %v931, %v1022
        %v1024 = vsel %vm844, %v1023, %v1019
        %v1025 = vlaneseq
        %v1026 = vshrl.u32 %v1025, 7
        %v1027 = vsub.s32 %v846, %v1026
        %v1028 = vrot.slane %v934, %v1027
        %v1029 = vsel %vm851, %v1028, %v1024
        %1031 = vst [vmem:[%s253] sm:$0x1] %v1029
        %s1032 = sand.u32 %s136, 1
        %s1033 = scalar_lea.sflag [#allocation3], %s1032
        %s1034 = sand.u32 %s136, 1
        %s1035 = scalar_lea.vmem [#allocation2], %s1034
        %s1036 = sand.u32 %s164, 1
        %s1037 = scalar_lea.sflag [#allocation5], %s1036
        %s1038 = sand.u32 %s164, 1
        %s1039 = scalar_lea.vmem [#allocation4], %s1038
        // Predicated region
        $region37: #{tpu_custom_call.1} parent=35 // pred_check
          %p1040 = pneg %p146
        $region38: #{tpu_custom_call.1} parent=35 // pred_check_branch
          %1042 = sbr.rel (%p1040) target = $region40
        $region39: #{tpu_custom_call.1} parent=35 // pred_region
          %s1044 = ssub.s32 16, 16
          %1045 = vsyncadd %s1033, %s1044
          %s1046 = sadd.s32 %s28, %s27
          %s1047 = smul.addr %s1046, 16
          %s1048 = scalar_lea.hbm %s4, %s1047
          %s1050 = sshll.u32 %s1035, 4
          %s1051 = int_to_ptr.vmem [resolvable:$true] %s1050
          %1053 = dma.vmem_to_hbm [thread:$0]  %s1051, 16, %s1048, %s1033
        $region40: #{tpu_custom_call.1} parent=35 // pred_fallthru
          _
        // Predicated region
        $region41: #{tpu_custom_call.1} parent=35 // pred_check
          %p1054 = pneg %p174
        $region42: #{tpu_custom_call.1} parent=35 // pred_check_branch
          %1056 = sbr.rel (%p1054) target = $region44
        $region43: #{tpu_custom_call.1} parent=35 // pred_region
          %s1058 = ssub.s32 16, 16
          %1059 = vsyncadd %s1037, %s1058
          %s1060 = sadd.s32 %s28, %s27
          %s1061 = smul.addr %s1060, 16
          %s1062 = scalar_lea.hbm %s5, %s1061
          %s1064 = sshll.u32 %s1039, 4
          %s1065 = int_to_ptr.vmem [resolvable:$true] %s1064
          %1067 = dma.vmem_to_hbm [thread:$0]  %s1065, 16, %s1062, %s1037
        $region44: #{tpu_custom_call.1} parent=35 // pred_fallthru
          _
      $region36: #{tpu_custom_call.1} parent=5 // pred_fallthru
        _
      %p1068 = scmp.le.s32.totalorder 2, %s18
      // Predicated region
      $region45: #{tpu_custom_call.1} parent=5 // pred_check
        %p1069 = pneg %p1068
      $region46: #{tpu_custom_call.1} parent=5 // pred_check_branch
        %1071 = sbr.rel (%p1069) target = $region48
      $region47: #{tpu_custom_call.1} parent=5 // pred_region
        %s1072 = ssub.s32 %s18, 2
        // Predicated region
        $region49: #{tpu_custom_call.1} parent=47 // pred_check
          %p1073 = pneg %p152
        $region50: #{tpu_custom_call.1} parent=47 // pred_check_branch
          %1075 = sbr.rel (%p1073) target = $region52
        $region51: #{tpu_custom_call.1} parent=47 // pred_region
          %s1076 = sand.u32 %s137, 1
          %s1077 = scalar_lea.sflag [#allocation3], %s1076
          %s1078 = sand.u32 %s137, 1
          %s1079 = scalar_lea.vmem [#allocation2], %s1078
          %1080 = dma.done %s1077, 16
        $region52: #{tpu_custom_call.1} parent=47 // pred_fallthru
          _
        // Predicated region
        $region53: #{tpu_custom_call.1} parent=47 // pred_check
          %p1081 = pneg %p180
        $region54: #{tpu_custom_call.1} parent=47 // pred_check_branch
          %1083 = sbr.rel (%p1081) target = $region56
        $region55: #{tpu_custom_call.1} parent=47 // pred_region
          %s1084 = sand.u32 %s165, 1
          %s1085 = scalar_lea.sflag [#allocation5], %s1084
          %s1086 = sand.u32 %s165, 1
          %s1087 = scalar_lea.vmem [#allocation4], %s1086
          %1088 = dma.done %s1085, 16
        $region56: #{tpu_custom_call.1} parent=47 // pred_fallthru
          _
      $region48: #{tpu_custom_call.1} parent=5 // pred_fallthru
        _
    $region6: #{tpu_custom_call.1} parent=1 // loop_footer
      %s22 = sadd.s32 1, %s18
    $region7: #{tpu_custom_call.1} parent=1 // loop_footer_branch
      %17 = sbr.rel target = $region3
    $region8: #{tpu_custom_call.1} parent=1 // loop_exit
      _
    %1089 = vsyncpa [#allocation3], 1
    %s1090 = scalar_lea.sflag [#allocation3], 1
    %1091 = vsyncpa %s1090, 1
    %1092 = vsyncpa [#allocation5], 1
    %s1093 = scalar_lea.sflag [#allocation5], 1
    %1094 = vsyncpa %s1093, 1

</llo_original>
